<compile_context>
chip_gen: v6e
topology: v6e:2x2x1
jax: 0.10.0
libtpu: 0.0.40
codegen_flags: <defaults>
</compile_context>

<pallas_src>
import jax
import jax.numpy as jnp
from jax.experimental import pallas as pl
from jax.experimental.pallas import tpu as pltpu


# ---------------------------------------------------------------------------
# helpers
# ---------------------------------------------------------------------------
def _round_up(x, m):
    return (x + m - 1) // m * m


def _pad_axis(x, target, axis):
    pad = target - x.shape[axis]
    if pad <= 0:
        return x
    widths = [(0, 0)] * x.ndim
    widths[axis] = (0, pad)
    return jnp.pad(x, widths)


def _pick_col_tile(total, cap):
    """Largest multiple of 128 that divides `total` (itself a multiple of 128)
    and is <= cap."""
    if total <= cap:
        return total
    t = (cap // 128) * 128
    while t >= 128:
        if total % t == 0:
            return t
        t -= 128
    return 128


# ---------------------------------------------------------------------------
# kernel
# ---------------------------------------------------------------------------
def _fusion_kernel(x_ref, w1_ref, b1_ref, wf_ref, bf_ref, o_ref, fused_ref):
    # Stage 1: merged projection over the concatenated [visual|text] features.
    # Computed once per batch tile (j == 0) and cached in VMEM scratch so it is
    # reused across all output-column tiles of the fusion layer.
    @pl.when(pl.program_id(1) == 0)
    def _():
        h = jnp.dot(x_ref[...], w1_ref[...],
                    preferred_element_type=jnp.float32)
        fused_ref[...] = jnp.maximum(h + b1_ref[...], 0.0)

    # Stage 2: fusion layer for the current output-column tile of Wf.
    out = jnp.dot(fused_ref[...].astype(wf_ref.dtype), wf_ref[...],
                  preferred_element_type=jnp.float32) + bf_ref[...]
    o_ref[...] = out.astype(o_ref.dtype)


# ---------------------------------------------------------------------------
# wrapper
# ---------------------------------------------------------------------------
def cross_modal_fusion(visual, text, params, *, bm=256, bn=512,
                       weight_dtype=None):
    """visual: [B, Dv], text: [B, Dt] -> [B, F]

    bm: batch (M) tile          -- 256 fills the v6e/v7x MXU; use 128 on v5e.
    bn: cap on the output-column tile of Wf (keeps Wf tiles VMEM-friendly).
    weight_dtype: e.g. jnp.bfloat16 to run the matmuls on the bf16 MXU path
                  (biases and accumulation stay f32).
    """
    wv, bv, wt, bt, wf, bf = (params["wv"], params["bv"], params["wt"],
                              params["bt"], params["wf"], params["bf"])
    B, Dv = visual.shape
    _, Dt = text.shape
    F = wv.shape[1]
    out_dtype = visual.dtype
    compute_dtype = weight_dtype if weight_dtype is not None else visual.dtype

    # Lane-dense padded dims (multiples of 128 on the lane axis).
    Dc = Dv + Dt
    Dc_pad = _round_up(Dc, 128)
    F_pad = _round_up(F, 128)

    # Batch tile: MXU-filling, clamped & 8-aligned for small batches.  For real
    # workloads the default gives a multi-step "parallel" grid axis, so v7x can
    # shard batch tiles across its two TensorCores.
    bm = _round_up(max(8, min(bm, _round_up(B, 8))), 8)
    # Output-column tile over Wf (keeps Wf from needing to be fully resident
    # for large fusion_dim -- important for v7x's 64 MiB VMEM).
    tn = _pick_col_tile(F_pad, max(128, bn))

    # ---- wrapper-side layout plumbing (no compute hoisting) ----
    x = jnp.concatenate([visual, text], axis=1)
    x = _pad_axis(x, Dc_pad, 1).astype(compute_dtype)

    w1 = jnp.concatenate([wv, wt], axis=0)                       # [Dv+Dt, F]
    w1 = _pad_axis(_pad_axis(w1, Dc_pad, 0), F_pad, 1).astype(compute_dtype)
    b1 = _pad_axis((bv + bt).reshape(1, F), F_pad, 1).astype(jnp.float32)

    wf_p = _pad_axis(_pad_axis(wf, F_pad, 0), F_pad, 1).astype(compute_dtype)
    bf_p = _pad_axis(bf.reshape(1, F), F_pad, 1).astype(jnp.float32)

    grid = (pl.cdiv(B, bm), F_pad // tn)

    # Rough VMEM budget (double-buffered tiles + resident W1 + fused scratch).
    w_bytes = jnp.dtype(compute_dtype).itemsize
    o_bytes = jnp.dtype(out_dtype).itemsize
    est = 2 * (bm * Dc_pad * w_bytes          # x tiles
               + Dc_pad * F_pad * w_bytes     # W1 (resident)
               + F_pad * 4                    # b1
               + F_pad * tn * w_bytes         # Wf column tile
               + tn * 4                       # bf column tile
               + bm * tn * o_bytes)           # output tile
    est += bm * F_pad * 4                     # fused activation scratch
    vmem_limit = int(min(max(est * 5 // 4, 32 * 2**20), 64 * 2**20))

    out_padded = pl.pallas_call(
        _fusion_kernel,
        out_shape=jax.ShapeDtypeStruct((B, F_pad), out_dtype),
        grid_spec=pltpu.PrefetchScalarGridSpec(
            num_scalar_prefetch=0,
            grid=grid,
            in_specs=[
                pl.BlockSpec((bm, Dc_pad), lambda i, j: (i, 0)),     # [v|t] tile
                pl.BlockSpec((Dc_pad, F_pad), lambda i, j: (0, 0)),  # W1 resident
                pl.BlockSpec((1, F_pad), lambda i, j: (0, 0)),       # b1 = bv+bt
                pl.BlockSpec((F_pad, tn), lambda i, j: (0, j)),      # Wf col tile
                pl.BlockSpec((1, tn), lambda i, j: (0, j)),          # bf col tile
            ],
            out_specs=pl.BlockSpec((bm, tn), lambda i, j: (i, j)),
            scratch_shapes=[pltpu.VMEM((bm, F_pad), jnp.float32)],   # fused act
        ),
        compiler_params=pltpu.CompilerParams(
            dimension_semantics=("parallel", "arbitrary"),
            vmem_limit_bytes=vmem_limit),
    )(x, w1, b1, wf_p, bf_p)

    # Slice the lane-padding back off.
    return out_padded[:, :F]


# ---------------------------------------------------------------------------
# parameters + pure-JAX reference
# ---------------------------------------------------------------------------
def init_params(key, visual_dim, text_dim, fusion_dim, dtype=jnp.float32):
    """Deterministic synthetic parameters (weights stored as [in, out])."""
    ks = jax.random.split(key, 6)
    sv = 1.0 / jnp.sqrt(visual_dim)
    st = 1.0 / jnp.sqrt(text_dim)
    sf = 1.0 / jnp.sqrt(fusion_dim)
    return {
        "wv": jax.random.uniform(ks[0], (visual_dim, fusion_dim), dtype, -sv, sv),
        "bv": jax.random.uniform(ks[1], (1, fusion_dim), dtype, -sv, sv),
        "wt": jax.random.uniform(ks[2], (text_dim, fusion_dim), dtype, -st, st),
        "bt": jax.random.uniform(ks[3], (1, fusion_dim), dtype, -st, st),
        "wf": jax.random.uniform(ks[4], (fusion_dim, fusion_dim), dtype, -sf, sf),
        "bf": jax.random.uniform(ks[5], (1, fusion_dim), dtype, -sf, sf),
    }


def reference(visual, text, p):
    v = visual @ p["wv"] + p["bv"]
    t = text @ p["wt"] + p["bt"]
    return jnp.maximum(v + t, 0.0) @ p["wf"] + p["bf"]


# ---------------------------------------------------------------------------
# self-test
# ---------------------------------------------------------------------------
if __name__ == "__main__":
    key = jax.random.PRNGKey(0)
    k_v, k_t, k_p, k_v2, k_t2, k_p2 = jax.random.split(key, 6)

    # --- toy shape matching the original module example ---
    B, Dv, Dt, F = 8, 32, 48, 64
    visual = jax.random.normal(k_v, (B, Dv), jnp.float32)
    text = jax.random.normal(k_t, (B, Dt), jnp.float32)
    params = init_params(k_p, Dv, Dt, F)

    out = jax.block_until_ready(cross_modal_fusion(visual, text, params))
    ref = reference(visual, text, params)
    assert out.shape == (B, F)
    assert jnp.allclose(out, ref, atol=1e-4, rtol=1e-4)

    # --- larger shape: multi-tile batch grid (partial last tile), Wf column
    #     tiling (2 N-tiles), f32 and bf16 compute paths ---
    B2, Dv2, Dt2, F2 = 200, 100, 60, 256
    visual2 = jax.random.normal(k_v2, (B2, Dv2), jnp.float32)
    text2 = jax.random.normal(k_t2, (B2, Dt2), jnp.float32)
    params2 = init_params(k_p2, Dv2, Dt2, F2)
    ref2 = reference(visual2, text2, params2)

    out2 = jax.block_until_ready(
        cross_modal_fusion(visual2, text2, params2, bm=128, bn=128))
    assert out2.shape == (B2, F2)
    assert jnp.allclose(out2, ref2, atol=1e-4, rtol=1e-4)

    out2_bf16 = jax.block_until_ready(
        cross_modal_fusion(visual2, text2, params2, bm=128, bn=128,
                           weight_dtype=jnp.bfloat16))
    assert jnp.allclose(out2_bf16, ref2, atol=1e-1, rtol=1e-1)

    print("KERNEL_OK")
</pallas_src>

<mosaic_0001>
module attributes {stable_mosaic.version = 11 : i64} {
  func.func @_fusion_kernel(%arg0: i32, %arg1: i32, %arg2: memref<8x128xf32, #tpu.memory_space<vmem>>, %arg3: memref<128x128xf32, #tpu.memory_space<vmem>>, %arg4: memref<1x128xf32, #tpu.memory_space<vmem>>, %arg5: memref<128x128xf32, #tpu.memory_space<vmem>>, %arg6: memref<1x128xf32, #tpu.memory_space<vmem>>, %arg7: memref<8x128xf32, #tpu.memory_space<vmem>>, %arg8: memref<8x128xf32, #tpu.memory_space<vmem>>) attributes {dimension_semantics = [#tpu.dimension_semantics<parallel>, #tpu.dimension_semantics<arbitrary>], iteration_bounds = array<i64: 1, 1>, scalar_prefetch = 0 : i64, scratch_operands = 1 : i64, tpu.core_type = #tpu.core_type<tc>, window_params = [{transform_indices = @transform_0, window_bounds = array<i64: 8, 128>}, {pipeline_mode = #tpu.pipeline_mode<synchronous>, transform_indices = @transform_1, window_bounds = array<i64: 128, 128>}, {pipeline_mode = #tpu.pipeline_mode<synchronous>, transform_indices = @transform_2, window_bounds = array<i64: 1, 128>}, {transform_indices = @transform_3, window_bounds = array<i64: 128, 128>}, {transform_indices = @transform_4, window_bounds = array<i64: 1, 128>}, {transform_indices = @transform_5, window_bounds = array<i64: 8, 128>}]} {
    %c0_i32 = arith.constant 0 : i32
    %0 = arith.cmpi eq, %arg1, %c0_i32 : i32
    %1 = arith.extui %0 : i1 to i32
    %c0_i32_0 = arith.constant 0 : i32
    %2 = arith.cmpi ne, %1, %c0_i32_0 : i32
    scf.if %2 {
      %c0_8 = arith.constant 0 : index
      %c0_9 = arith.constant 0 : index
      %10 = vector.load %arg2[%c0_8, %c0_9] : memref<8x128xf32, #tpu.memory_space<vmem>>, vector<8x128xf32>
      %c0_10 = arith.constant 0 : index
      %c0_11 = arith.constant 0 : index
      %11 = vector.load %arg3[%c0_10, %c0_11] : memref<128x128xf32, #tpu.memory_space<vmem>>, vector<128x128xf32>
      %cst_12 = arith.constant dense<0.000000e+00> : vector<8x128xf32>
      %12 = tpu.matmul %10, %11, %cst_12 {dimension_numbers = #tpu.dot_dimension_numbers<[1], [0], [0], [1], [0, 0, 1, 1], [], []>} : vector<8x128xf32>, vector<128x128xf32>, vector<8x128xf32> -> vector<8x128xf32>
      %c0_13 = arith.constant 0 : index
      %c0_14 = arith.constant 0 : index
      %13 = vector.load %arg4[%c0_13, %c0_14] : memref<1x128xf32, #tpu.memory_space<vmem>>, vector<1x128xf32>
      %14 = vector.broadcast %13 : vector<1x128xf32> to vector<8x128xf32>
      %15 = arith.addf %12, %14 : vector<8x128xf32>
      %cst_15 = arith.constant 0.000000e+00 : f32
      %16 = vector.broadcast %cst_15 : f32 to vector<8x128xf32>
      %17 = arith.maximumf %15, %16 : vector<8x128xf32>
      %c0_16 = arith.constant 0 : index
      %c0_17 = arith.constant 0 : index
      %18 = vector.load %arg8[%c0_16, %c0_17] : memref<8x128xf32, #tpu.memory_space<vmem>>, vector<8x128xf32>
      tpu.vector_store %arg8[%c0_16, %c0_17], %17 {strides = array<i32>} : memref<8x128xf32, #tpu.memory_space<vmem>>, vector<8x128xf32>,
    } else {
    }
    %c0 = arith.constant 0 : index
    %c0_1 = arith.constant 0 : index
    %3 = vector.load %arg8[%c0, %c0_1] : memref<8x128xf32, #tpu.memory_space<vmem>>, vector<8x128xf32>
    %c0_2 = arith.constant 0 : index
    %c0_3 = arith.constant 0 : index
    %4 = vector.load %arg5[%c0_2, %c0_3] : memref<128x128xf32, #tpu.memory_space<vmem>>, vector<128x128xf32>
    %cst = arith.constant dense<0.000000e+00> : vector<8x128xf32>
    %5 = tpu.matmul %3, %4, %cst {dimension_numbers = #tpu.dot_dimension_numbers<[1], [0], [0], [1], [0, 0, 1, 1], [], []>} : vector<8x128xf32>, vector<128x128xf32>, vector<8x128xf32> -> vector<8x128xf32>
    %c0_4 = arith.constant 0 : index
    %c0_5 = arith.constant 0 : index
    %6 = vector.load %arg6[%c0_4, %c0_5] : memref<1x128xf32, #tpu.memory_space<vmem>>, vector<1x128xf32>
    %7 = vector.broadcast %6 : vector<1x128xf32> to vector<8x128xf32>
    %8 = arith.addf %5, %7 : vector<8x128xf32>
    %c0_6 = arith.constant 0 : index
    %c0_7 = arith.constant 0 : index
    %9 = vector.load %arg7[%c0_6, %c0_7] : memref<8x128xf32, #tpu.memory_space<vmem>>, vector<8x128xf32>
    tpu.vector_store %arg7[%c0_6, %c0_7], %8 {strides = array<i32>} : memref<8x128xf32, #tpu.memory_space<vmem>>, vector<8x128xf32>,
    return
  }
  func.func @transform_0(%arg0: i32, %arg1: i32) -> (i32, i32) {
    %c0_i32 = arith.constant 0 : i32
    %c0_i32_0 = arith.constant 0 : i32
    return %arg0, %c0_i32 : i32, i32
  }
  func.func @transform_1(%arg0: i32, %arg1: i32) -> (i32, i32) {
    %c0_i32 = arith.constant 0 : i32
    %c0_i32_0 = arith.constant 0 : i32
    %c0_i32_1 = arith.constant 0 : i32
    return %c0_i32, %c0_i32_0 : i32, i32
  }
  func.func @transform_2(%arg0: i32, %arg1: i32) -> (i32, i32) {
    %c0_i32 = arith.constant 0 : i32
    %c0_i32_0 = arith.constant 0 : i32
    %c0_i32_1 = arith.constant 0 : i32
    return %c0_i32, %c0_i32_0 : i32, i32
  }
  func.func @transform_3(%arg0: i32, %arg1: i32) -> (i32, i32) {
    %c0_i32 = arith.constant 0 : i32
    %c0_i32_0 = arith.constant 0 : i32
    return %c0_i32, %arg1 : i32, i32
  }
  func.func @transform_4(%arg0: i32, %arg1: i32) -> (i32, i32) {
    %c0_i32 = arith.constant 0 : i32
    %c0_i32_0 = arith.constant 0 : i32
    return %c0_i32, %arg1 : i32, i32
  }
  func.func @transform_5(%arg0: i32, %arg1: i32) -> (i32, i32) {
    %c0_i32 = arith.constant 0 : i32
    return %arg0, %arg1 : i32, i32
  }
}

</mosaic_0001>

<llo_original>
// kernel: tpu_custom_call.1
$region0: #{tpu_custom_call.1}
  #allocation0 [shape = 'u32[]', space=smem, size = 0x4, offset = 0x4, fixed_abs, tag = 'smem constant byte address 0x4 - core index']
  #allocation1 [shape = 'u32[144,128]{1,0:T(1,128)}', space=vmem, size = 0x12000, scoped, tag = 'internal scratch']
  #allocation2 [shape = 'f32[8,128]{1,0:T(8,128)}', space=vmem, size = 0x1000, scoped, tag = 'scratch operand']
  %s0 = inlined_call_operand.hbm [shape: f32[8,128], index: 0, kind: input, shape index: {}]
  %s1 = inlined_call_operand.hbm [shape: f32[128,128], index: 1, kind: input, shape index: {}]
  %s2 = inlined_call_operand.vmem [shape: f32[1,128], index: 2, kind: input, shape index: {}]
  %s3 = inlined_call_operand.hbm [shape: f32[128,128], index: 3, kind: input, shape index: {}]
  %s4 = inlined_call_operand.vmem [shape: f32[1,128], index: 4, kind: input, shape index: {}]
  %s5 = inlined_call_operand.hbm [shape: f32[8,128], index: 5, kind: output, shape index: {}]
  %s6 = sld [smem:[#allocation0]]
  $region46: #{tpu_custom_call.1} parent=0
    _
  %s8 = ssub.s32 1, %s6
  %s9 = scalar_select 0, %s8, %s6
  $region1: #{tpu_custom_call.1} parent=0
    #allocation3 [shape = 'u8[4096]{0}', space=vmem, size = 0x1000, scoped, tag = 'input window, operand 0, single buffered']
    #allocation4 [shape = 's32[1]{0}', space=sflag, size = 0x4, scoped, tag = 'scoped memory for tpu_custom_call.1']
    #allocation5 [shape = 's32[1]{0}', space=sflag, size = 0x4, scoped, tag = 'scoped memory for tpu_custom_call.1']
    #allocation6 [shape = 'u8[65536]{0}', space=vmem, size = 0x10000, scoped, tag = 'input window, operand 1, single buffered']
    #allocation7 [shape = 's32[1]{0}', space=sflag, size = 0x4, scoped, tag = 'scoped memory for tpu_custom_call.1']
    #allocation8 [shape = 'u8[65536]{0}', space=vmem, size = 0x10000, scoped, tag = 'input window, operand 3, single buffered']
    #allocation9 [shape = 'u8[4096]{0}', space=vmem, size = 0x1000, scoped, tag = 'output window, operand 0, single buffered']
    %10 = vsyncpa [#allocation4], 0
    %11 = vsyncpa [#allocation7], 0
    %12 = vsyncpa [#allocation5], 0
    // Predicated region
    $region2: #{tpu_custom_call.1} parent=1 // pred_check
      _
    $region3: #{tpu_custom_call.1} parent=1 // pred_check_branch
      %14 = sbr.rel (0) target = $region5
    $region4: #{tpu_custom_call.1} parent=1 // pred_region
      %s16 = ssub.s32 128, 128
      %17 = vsyncadd [#allocation4], %s16
      %s19 = sshll.u32 [#allocation3], 4
      %s20 = int_to_ptr.vmem [resolvable:$true] %s19
      %22 = dma.hbm_to_vmem [thread:$0]  %s0, 128, %s20, [#allocation4]
    $region5: #{tpu_custom_call.1} parent=1 // pred_fallthru
      _
    // Predicated region
    $region6: #{tpu_custom_call.1} parent=1 // pred_check
      _
    $region7: #{tpu_custom_call.1} parent=1 // pred_check_branch
      %24 = sbr.rel (0) target = $region9
    $region8: #{tpu_custom_call.1} parent=1 // pred_region
      %s26 = ssub.s32 2048, 2048
      %27 = vsyncadd [#allocation7], %s26
      %s28 = sshll.u32 [#allocation6], 4
      %s29 = int_to_ptr.vmem [resolvable:$true] %s28
      %34 = dma.hbm_to_vmem [thread:$0]  %s1, 2048, %s29, [#allocation7], 128, 128, 8
    $region9: #{tpu_custom_call.1} parent=1 // pred_fallthru
      _
    // Predicated region
    $region10: #{tpu_custom_call.1} parent=1 // pred_check
      _
    $region11: #{tpu_custom_call.1} parent=1 // pred_check_branch
      %36 = sbr.rel (0) target = $region13
    $region12: #{tpu_custom_call.1} parent=1 // pred_region
      _
    $region13: #{tpu_custom_call.1} parent=1 // pred_fallthru
      _
    // Predicated region
    $region14: #{tpu_custom_call.1} parent=1 // pred_check
      _
    $region15: #{tpu_custom_call.1} parent=1 // pred_check_branch
      %38 = sbr.rel (0) target = $region17
    $region16: #{tpu_custom_call.1} parent=1 // pred_region
      %s40 = ssub.s32 2048, 2048
      %41 = vsyncadd [#allocation7], %s40
      %s42 = sshll.u32 [#allocation8], 4
      %s43 = int_to_ptr.vmem [resolvable:$true] %s42
      %48 = dma.hbm_to_vmem [thread:$0]  %s3, 2048, %s43, [#allocation7], 128, 128, 8
    $region17: #{tpu_custom_call.1} parent=1 // pred_fallthru
      _
    // Predicated region
    $region18: #{tpu_custom_call.1} parent=1 // pred_check
      _
    $region19: #{tpu_custom_call.1} parent=1 // pred_check_branch
      %50 = sbr.rel (0) target = $region21
    $region20: #{tpu_custom_call.1} parent=1 // pred_region
      _
    $region21: #{tpu_custom_call.1} parent=1 // pred_fallthru
      _
    // Predicated region
    $region22: #{tpu_custom_call.1} parent=1 // pred_check
      _
    $region23: #{tpu_custom_call.1} parent=1 // pred_check_branch
      %52 = sbr.rel (0) target = $region25
    $region24: #{tpu_custom_call.1} parent=1 // pred_region
      %53 = dma.done [#allocation4], 128
    $region25: #{tpu_custom_call.1} parent=1 // pred_fallthru
      _
    // Predicated region
    $region26: #{tpu_custom_call.1} parent=1 // pred_check
      _
    $region27: #{tpu_custom_call.1} parent=1 // pred_check_branch
      %55 = sbr.rel (0) target = $region29
    $region28: #{tpu_custom_call.1} parent=1 // pred_region
      %56 = dma.done [#allocation7], 2048
    $region29: #{tpu_custom_call.1} parent=1 // pred_fallthru
      _
    // Predicated region
    $region30: #{tpu_custom_call.1} parent=1 // pred_check
      _
    $region31: #{tpu_custom_call.1} parent=1 // pred_check_branch
      %58 = sbr.rel (0) target = $region33
    $region32: #{tpu_custom_call.1} parent=1 // pred_region
      %59 = dma.done [#allocation7], 2048
    $region33: #{tpu_custom_call.1} parent=1 // pred_fallthru
      _
    %p60 = scmp.eq.s32.totalorder 0, 0
    // Predicated region
    $region34: #{tpu_custom_call.1} parent=1 // pred_check
      %p61 = pneg %p60
    $region35: #{tpu_custom_call.1} parent=1 // pred_check_branch
      %63 = sbr.rel (%p61) target = $region37
    $region36: #{tpu_custom_call.1} parent=1 // pred_region
      %v64 = vld [vmem:[#allocation3] sm:$0xff]
      %v65 = vld [vmem:[#allocation6] sm:$0xff]
      %v66 = vld [vmem:[#allocation6 + $0x8] sm:$0xff]
      %v67 = vld [vmem:[#allocation6 + $0x10] sm:$0xff]
      %v68 = vld [vmem:[#allocation6 + $0x18] sm:$0xff]
      %v69 = vld [vmem:[#allocation6 + $0x20] sm:$0xff]
      %v70 = vld [vmem:[#allocation6 + $0x28] sm:$0xff]
      %v71 = vld [vmem:[#allocation6 + $0x30] sm:$0xff]
      %v72 = vld [vmem:[#allocation6 + $0x38] sm:$0xff]
      %v73 = vld [vmem:[#allocation6 + $0x40] sm:$0xff]
      %v74 = vld [vmem:[#allocation6 + $0x48] sm:$0xff]
      %v75 = vld [vmem:[#allocation6 + $0x50] sm:$0xff]
      %v76 = vld [vmem:[#allocation6 + $0x58] sm:$0xff]
      %v77 = vld [vmem:[#allocation6 + $0x60] sm:$0xff]
      %v78 = vld [vmem:[#allocation6 + $0x68] sm:$0xff]
      %v79 = vld [vmem:[#allocation6 + $0x70] sm:$0xff]
      %v80 = vld [vmem:[#allocation6 + $0x78] sm:$0xff]
      %v81 = vld [vmem:[%s2] sm:$0x1]
      %v83 = vlaneseq
      %v84 = vshrl.u32 %v83, 7
      %v85 = vsub.s32 0, %v84
      %v86 = vrot.slane %v81, %v85
      %88 = vmatprep.subr.mxu0 0.0
      %89 = vmatpush1.msra.mxu0 %v80
      %90 = vmatprep.subr.mxu0 0.0
      %91 = vmatpush1.msra.mxu0 %v79
      %92 = vmatprep.subr.mxu0 0.0
      %93 = vmatpush1.msra.mxu0 %v78
      %94 = vmatprep.subr.mxu0 0.0
      %95 = vmatpush1.msra.mxu0 %v77
      %96 = vmatprep.subr.mxu0 0.0
      %97 = vmatpush1.msra.mxu0 %v76
      %98 = vmatprep.subr.mxu0 0.0
      %99 = vmatpush1.msra.mxu0 %v75
      %100 = vmatprep.subr.mxu0 0.0
      %101 = vmatpush1.msra.mxu0 %v74
      %102 = vmatprep.subr.mxu0 0.0
      %103 = vmatpush1.msra.mxu0 %v73
      %104 = vmatprep.subr.mxu0 0.0
      %105 = vmatpush1.msra.mxu0 %v72
      %106 = vmatprep.subr.mxu0 0.0
      %107 = vmatpush1.msra.mxu0 %v71
      %108 = vmatprep.subr.mxu0 0.0
      %109 = vmatpush1.msra.mxu0 %v70
      %110 = vmatprep.subr.mxu0 0.0
      %111 = vmatpush1.msra.mxu0 %v69
      %112 = vmatprep.subr.mxu0 0.0
      %113 = vmatpush1.msra.mxu0 %v68
      %114 = vmatprep.subr.mxu0 0.0
      %115 = vmatpush1.msra.mxu0 %v67
      %116 = vmatprep.subr.mxu0 0.0
      %117 = vmatpush1.msra.mxu0 %v66
      %118 = vmatprep.subr.mxu0 0.0
      %119 = vmatpush1.msra.mxu0 %v65
      %120 = vmatprep.subr.mxu0 0.0
      %121 = vmatpush2.msra.mxu0 0.0
      %122 = vmatprep.subr.mxu0 0.0
      %123 = vmatpush2.msra.mxu0 0.0
      %124 = vmatprep.subr.mxu0 0.0
      %125 = vmatpush2.msra.mxu0 0.0
      %126 = vmatprep.subr.mxu0 0.0
      %127 = vmatpush2.msra.mxu0 0.0
      %128 = vmatprep.subr.mxu0 0.0
      %129 = vmatpush2.msra.mxu0 0.0
      %130 = vmatprep.subr.mxu0 0.0
      %131 = vmatpush2.msra.mxu0 0.0
      %132 = vmatprep.subr.mxu0 0.0
      %133 = vmatpush2.msra.mxu0 0.0
      %134 = vmatprep.subr.mxu0 0.0
      %135 = vmatpush2.msra.mxu0 0.0
      %136 = vmatprep.subr.mxu0 0.0
      %137 = vmatpush2.msra.mxu0 0.0
      %138 = vmatprep.subr.mxu0 0.0
      %139 = vmatpush2.msra.mxu0 0.0
      %140 = vmatprep.subr.mxu0 0.0
      %141 = vmatpush2.msra.mxu0 0.0
      %142 = vmatprep.subr.mxu0 0.0
      %143 = vmatpush2.msra.mxu0 0.0
      %144 = vmatprep.subr.mxu0 0.0
      %145 = vmatpush2.msra.mxu0 0.0
      %146 = vmatprep.subr.mxu0 0.0
      %147 = vmatpush2.msra.mxu0 0.0
      %148 = vmatprep.subr.mxu0 0.0
      %149 = vmatpush2.msra.mxu0 0.0
      %150 = vmatprep.subr.mxu0 0.0
      %151 = vmatpush2.msra.mxu0 0.0
      %152 = vmatprep.mubr.f32.mxu0 0.0
      %153 = vmatmul.mubr.f32.gmra.mxu0 %v64
      %v154 = vpop.f32.mrf.mxu0
      %v155 = vadd.f32 %v86, %v154
      %v156 = vpop.f32.mrf.mxu0
      %157 = vdwg.mxu0
      %v158 = vmax.f32 %v155, 0.0
      %159 = vst [vmem:[#allocation2] sm:$0xff] %v158
    $region37: #{tpu_custom_call.1} parent=1 // pred_fallthru
      _
    %v160 = vld [vmem:[#allocation2] sm:$0xff]
    %v161 = vld [vmem:[#allocation8] sm:$0xff]
    %v162 = vld [vmem:[#allocation8 + $0x8] sm:$0xff]
    %v163 = vld [vmem:[#allocation8 + $0x10] sm:$0xff]
    %v164 = vld [vmem:[#allocation8 + $0x18] sm:$0xff]
    %v165 = vld [vmem:[#allocation8 + $0x20] sm:$0xff]
    %v166 = vld [vmem:[#allocation8 + $0x28] sm:$0xff]
    %v167 = vld [vmem:[#allocation8 + $0x30] sm:$0xff]
    %v168 = vld [vmem:[#allocation8 + $0x38] sm:$0xff]
    %v169 = vld [vmem:[#allocation8 + $0x40] sm:$0xff]
    %v170 = vld [vmem:[#allocation8 + $0x48] sm:$0xff]
    %v171 = vld [vmem:[#allocation8 + $0x50] sm:$0xff]
    %v172 = vld [vmem:[#allocation8 + $0x58] sm:$0xff]
    %v173 = vld [vmem:[#allocation8 + $0x60] sm:$0xff]
    %v174 = vld [vmem:[#allocation8 + $0x68] sm:$0xff]
    %v175 = vld [vmem:[#allocation8 + $0x70] sm:$0xff]
    %v176 = vld [vmem:[#allocation8 + $0x78] sm:$0xff]
    %v177 = vld [vmem:[%s4] sm:$0x1]
    %v179 = vlaneseq
    %v180 = vshrl.u32 %v179, 7
    %v181 = vsub.s32 0, %v180
    %v182 = vrot.slane %v177, %v181
    %184 = vmatprep.subr.mxu0 0.0
    %185 = vmatpush1.msra.mxu0 %v176
    %186 = vmatprep.subr.mxu0 0.0
    %187 = vmatpush1.msra.mxu0 %v175
    %188 = vmatprep.subr.mxu0 0.0
    %189 = vmatpush1.msra.mxu0 %v174
    %190 = vmatprep.subr.mxu0 0.0
    %191 = vmatpush1.msra.mxu0 %v173
    %192 = vmatprep.subr.mxu0 0.0
    %193 = vmatpush1.msra.mxu0 %v172
    %194 = vmatprep.subr.mxu0 0.0
    %195 = vmatpush1.msra.mxu0 %v171
    %196 = vmatprep.subr.mxu0 0.0
    %197 = vmatpush1.msra.mxu0 %v170
    %198 = vmatprep.subr.mxu0 0.0
    %199 = vmatpush1.msra.mxu0 %v169
    %200 = vmatprep.subr.mxu0 0.0
    %201 = vmatpush1.msra.mxu0 %v168
    %202 = vmatprep.subr.mxu0 0.0
    %203 = vmatpush1.msra.mxu0 %v167
    %204 = vmatprep.subr.mxu0 0.0
    %205 = vmatpush1.msra.mxu0 %v166
    %206 = vmatprep.subr.mxu0 0.0
    %207 = vmatpush1.msra.mxu0 %v165
    %208 = vmatprep.subr.mxu0 0.0
    %209 = vmatpush1.msra.mxu0 %v164
    %210 = vmatprep.subr.mxu0 0.0
    %211 = vmatpush1.msra.mxu0 %v163
    %212 = vmatprep.subr.mxu0 0.0
    %213 = vmatpush1.msra.mxu0 %v162
    %214 = vmatprep.subr.mxu0 0.0
    %215 = vmatpush1.msra.mxu0 %v161
    %216 = vmatprep.subr.mxu0 0.0
    %217 = vmatpush2.msra.mxu0 0.0
    %218 = vmatprep.subr.mxu0 0.0
    %219 = vmatpush2.msra.mxu0 0.0
    %220 = vmatprep.subr.mxu0 0.0
    %221 = vmatpush2.msra.mxu0 0.0
    %222 = vmatprep.subr.mxu0 0.0
    %223 = vmatpush2.msra.mxu0 0.0
    %224 = vmatprep.subr.mxu0 0.0
    %225 = vmatpush2.msra.mxu0 0.0
    %226 = vmatprep.subr.mxu0 0.0
    %227 = vmatpush2.msra.mxu0 0.0
    %228 = vmatprep.subr.mxu0 0.0
    %229 = vmatpush2.msra.mxu0 0.0
    %230 = vmatprep.subr.mxu0 0.0
    %231 = vmatpush2.msra.mxu0 0.0
    %232 = vmatprep.subr.mxu0 0.0
    %233 = vmatpush2.msra.mxu0 0.0
    %234 = vmatprep.subr.mxu0 0.0
    %235 = vmatpush2.msra.mxu0 0.0
    %236 = vmatprep.subr.mxu0 0.0
    %237 = vmatpush2.msra.mxu0 0.0
    %238 = vmatprep.subr.mxu0 0.0
    %239 = vmatpush2.msra.mxu0 0.0
    %240 = vmatprep.subr.mxu0 0.0
    %241 = vmatpush2.msra.mxu0 0.0
    %242 = vmatprep.subr.mxu0 0.0
    %243 = vmatpush2.msra.mxu0 0.0
    %244 = vmatprep.subr.mxu0 0.0
    %245 = vmatpush2.msra.mxu0 0.0
    %246 = vmatprep.subr.mxu0 0.0
    %247 = vmatpush2.msra.mxu0 0.0
    %248 = vmatprep.mubr.f32.mxu0 0.0
    %249 = vmatmul.mubr.f32.gmra.mxu0 %v160
    %v250 = vpop.f32.mrf.mxu0
    %v251 = vadd.f32 %v182, %v250
    %v252 = vpop.f32.mrf.mxu0
    %253 = vdwg.mxu0
    %254 = vst [vmem:[#allocation9] sm:$0xff] %v251
    // Predicated region
    $region38: #{tpu_custom_call.1} parent=1 // pred_check
      _
    $region39: #{tpu_custom_call.1} parent=1 // pred_check_branch
      %256 = sbr.rel (0) target = $region41
    $region40: #{tpu_custom_call.1} parent=1 // pred_region
      %s258 = ssub.s32 128, 128
      %259 = vsyncadd [#allocation5], %s258
      %s261 = sshll.u32 [#allocation9], 4
      %s262 = int_to_ptr.vmem [resolvable:$true] %s261
      %264 = dma.vmem_to_hbm [thread:$0]  %s262, 128, %s5, [#allocation5]
    $region41: #{tpu_custom_call.1} parent=1 // pred_fallthru
      _
    // Predicated region
    $region42: #{tpu_custom_call.1} parent=1 // pred_check
      _
    $region43: #{tpu_custom_call.1} parent=1 // pred_check_branch
      %266 = sbr.rel (0) target = $region45
    $region44: #{tpu_custom_call.1} parent=1 // pred_region
      %267 = dma.done [#allocation5], 128
    $region45: #{tpu_custom_call.1} parent=1 // pred_fallthru
      _
    %268 = vsyncpa [#allocation4], 1
    %269 = vsyncpa [#allocation7], 1
    %270 = vsyncpa [#allocation5], 1

</llo_original>
